<compile_context>
chip_gen: v5e
topology: v5e:2x2
jax: 0.10.0
libtpu: 0.0.40
codegen_flags: <defaults>
</compile_context>

<pallas_src>
import functools

import jax
import jax.numpy as jnp
from jax.experimental import pallas as pl
from jax.experimental.pallas import tpu as pltpu


def _round_up(x, m):
    return ((x + m - 1) // m) * m


def _choose_block_n(n, c, dtype, vmem_budget_bytes=24 * 1024 * 1024):
    """Pick the largest row-tile that fits the VMEM budget (double-buffered)."""
    lane = 128
    itemsize = jnp.dtype(dtype).itemsize
    sublane = 8 if itemsize >= 4 else (16 if itemsize == 2 else 32)
    c_pad = _round_up(c, lane)
    # 2 buffers for the logits tile + 2 buffers for the (block_n, 1->128 lane
    # padded) int32 target tile.
    bytes_per_row = 2 * c_pad * itemsize + 2 * lane * 4
    bn = vmem_budget_bytes // bytes_per_row
    bn = max(sublane, min(4096, bn))
    bn = (bn // sublane) * sublane
    # No point tiling past the (sublane-rounded) row count.
    bn = min(bn, _round_up(n, sublane))
    return bn


def _tversky_block_kernel(x_ref, t_ref, sum_ref, cnt_ref, *,
                          alpha, beta, gamma, scale, eps, smooth,
                          ignore_index):
    x = x_ref[...].astype(jnp.float32)                     # (TN, C)
    t = t_ref[...]                                         # (TN, 1) int32

    # Numerically stable softmax pieces over the class (lane) dim.
    m = jnp.max(x, axis=-1, keepdims=True)
    e = jnp.exp(x - m)
    sum_e = jnp.sum(e, axis=-1, keepdims=True)             # (TN, 1)

    # one-hot(target) via iota compare (broadcast (TN,1) against (TN,C)).
    cls = jax.lax.broadcasted_iota(jnp.int32, x.shape, 1)
    one_hot = (cls == t).astype(jnp.float32)

    if gamma == 0:
        # Focal modulation degenerates to scale * p. Avoid the per-element
        # normalization: reduce unnormalized e, then one per-row divide.
        inter_e = jnp.sum(e * one_hot, axis=-1, keepdims=True)
        inter = scale * (inter_e / sum_e)                  # (TN, 1)
        s_mod = jnp.full_like(inter, scale)                # sum_c scale*p == scale
    else:
        p = e / sum_e
        if gamma == 1:
            p_mod = scale * (1.0 - p) * p
        elif gamma == 2:
            omp = 1.0 - p
            p_mod = scale * omp * omp * p
        else:
            p_mod = scale * (1.0 - p) ** gamma * p
        inter = jnp.sum(p_mod * one_hot, axis=-1, keepdims=True)
        s_mod = jnp.sum(p_mod, axis=-1, keepdims=True)

    # Algebraic identities (ignored/padded rows are masked out below, so the
    # "1" in fns for those rows is irrelevant):
    #   fps = sum(p_mod * (1 - one_hot)) = s_mod - inter
    #   fns = sum((1 - p_mod) * one_hot) = sum(one_hot) - inter = 1 - inter
    fps = s_mod - inter
    fns = 1.0 - inter

    numerator = inter + smooth
    denominator = inter + alpha * fps + beta * fns + eps + smooth
    loss = 1.0 - numerator / denominator                   # (TN, 1)

    valid = (t != ignore_index).astype(jnp.float32)        # (TN, 1)

    # Per-block partials → parallel grid, pairwise-style final reduction.
    sum_ref[...] = jnp.sum(loss * valid).reshape(1, 1, 1)
    cnt_ref[...] = jnp.sum(valid).reshape(1, 1, 1)


def tversky_loss(logits, target, *, alpha=0.5, beta=0.5, gamma=0, scale=1.0,
                 eps=1e-6, smooth=0.0, ignore_index=-100, block_n=None):
    """Pallas TverskyLoss forward with reduction='mean'.

    logits: (N, C) float (f32 or bf16), target: (N,) int. Returns a scalar
    float32. Rows with target == ignore_index are excluded from the mean.
    """
    n, c = logits.shape
    if block_n is None:
        block_n = _choose_block_n(n, c, logits.dtype)

    t = target.astype(jnp.int32)
    n_pad = _round_up(n, block_n)
    if n_pad != n:
        # Pad with ignored rows so they never contribute to the loss or count.
        logits = jnp.pad(logits, ((0, n_pad - n), (0, 0)))
        t = jnp.pad(t, (0, n_pad - n), constant_values=ignore_index)
    t2d = t.reshape(n_pad, 1)
    num_blocks = n_pad // block_n

    kernel = functools.partial(
        _tversky_block_kernel, alpha=alpha, beta=beta, gamma=gamma,
        scale=scale, eps=eps, smooth=smooth, ignore_index=ignore_index)

    # TODO(synk): for very small C (<128) a lane-packing layout (k=128//C rows
    # per vreg row with segmented reductions) would reclaim idle lanes on v7x.
    sums, cnts = pl.pallas_call(
        kernel,
        out_shape=(
            jax.ShapeDtypeStruct((num_blocks, 1, 1), jnp.float32),
            jax.ShapeDtypeStruct((num_blocks, 1, 1), jnp.float32),
        ),
        grid_spec=pltpu.PrefetchScalarGridSpec(
            num_scalar_prefetch=0,
            grid=(num_blocks,),
            in_specs=[
                pl.BlockSpec((block_n, c), lambda i: (i, 0)),
                pl.BlockSpec((block_n, 1), lambda i: (i, 0)),
            ],
            out_specs=(
                pl.BlockSpec((1, 1, 1), lambda i: (i, 0, 0)),
                pl.BlockSpec((1, 1, 1), lambda i: (i, 0, 0)),
            ),
        ),
        compiler_params=pltpu.CompilerParams(
            dimension_semantics=("parallel",),
            vmem_limit_bytes=32 * 1024 * 1024),
    )(logits, t2d)

    # 'mean' reduction over valid (non-ignored) rows.
    return (jnp.sum(sums) / jnp.sum(cnts)).astype(jnp.float32)


def tversky_loss_ref(logits, target, *, alpha=0.5, beta=0.5, gamma=0,
                     scale=1.0, eps=1e-6, smooth=0.0, ignore_index=-100):
    """Pure-JAX reference mirroring the PyTorch module (reduction='mean')."""
    p = jax.nn.softmax(logits.astype(jnp.float32), axis=1)
    p = scale * (1.0 - p) ** gamma * p
    valid = target != ignore_index
    one_hot = jax.nn.one_hot(jnp.where(valid, target, 0), logits.shape[1],
                             dtype=jnp.float32)
    inter = jnp.sum(p * one_hot, -1)
    fps = jnp.sum(p * (1.0 - one_hot), -1)
    fns = jnp.sum((1.0 - p) * one_hot, -1)
    loss = 1.0 - (inter + smooth) / (inter + alpha * fps + beta * fns + eps + smooth)
    vf = valid.astype(jnp.float32)
    return jnp.sum(loss * vf) / jnp.sum(vf)


if __name__ == "__main__":
    key = jax.random.PRNGKey(0)
    k1, k2, k3, k4 = jax.random.split(key, 4)

    # Case 1: f32, gamma=0 (fast path), ignored rows, auto-sized single block.
    N, C = 128, 16
    logits = jax.random.normal(k1, (N, C), dtype=jnp.float32)
    target = jax.random.randint(k2, (N,), 0, C, dtype=jnp.int32)
    target = target.at[::13].set(-100)
    out = jax.block_until_ready(tversky_loss(logits, target))
    ref = tversky_loss_ref(logits, target)
    assert jnp.allclose(out, ref, atol=1e-5, rtol=1e-5), (out, ref)

    # Case 2: ragged N (wrapper pads with ignored rows), gamma=2 specialization,
    # non-trivial alpha/beta/scale/smooth.
    N2, C2 = 100, 24
    logits2 = jax.random.normal(k3, (N2, C2), dtype=jnp.float32)
    target2 = jax.random.randint(k4, (N2,), 0, C2, dtype=jnp.int32)
    out2 = jax.block_until_ready(
        tversky_loss(logits2, target2, alpha=0.3, beta=0.7, gamma=2,
                     scale=0.75, smooth=0.1))
    ref2 = tversky_loss_ref(logits2, target2, alpha=0.3, beta=0.7, gamma=2,
                            scale=0.75, smooth=0.1)
    assert jnp.allclose(out2, ref2, atol=1e-5, rtol=1e-5), (out2, ref2)

    # Case 3: bf16 logits, multi-block parallel grid (explicit block_n).
    N3, C3 = 512, 16
    logits3 = jax.random.normal(k1, (N3, C3), dtype=jnp.bfloat16)
    target3 = jax.random.randint(k2, (N3,), 0, C3, dtype=jnp.int32)
    out3 = jax.block_until_ready(tversky_loss(logits3, target3, block_n=128))
    ref3 = tversky_loss_ref(logits3, target3)
    assert jnp.allclose(out3, ref3, atol=1e-4, rtol=1e-4), (out3, ref3)

    print("KERNEL_OK")
</pallas_src>

<mosaic_0001>
module attributes {stable_mosaic.version = 11 : i64} {
  func.func @_tversky_block_kernel(%arg0: i32, %arg1: memref<128x16xf32, #tpu.memory_space<vmem>>, %arg2: memref<128x1xi32, #tpu.memory_space<vmem>>, %arg3: memref<1x1x1xf32, #tpu.memory_space<vmem>>, %arg4: memref<1x1x1xf32, #tpu.memory_space<vmem>>) attributes {dimension_semantics = [#tpu.dimension_semantics<parallel>], iteration_bounds = array<i64: 1>, scalar_prefetch = 0 : i64, scratch_operands = 0 : i64, tpu.core_type = #tpu.core_type<tc>, window_params = [{transform_indices = @transform_0, window_bounds = array<i64: 128, 16>}, {transform_indices = @transform_1, window_bounds = array<i64: 128, 1>}, {transform_indices = @transform_2, window_bounds = array<i64: 1, 1, 1>}, {transform_indices = @transform_3, window_bounds = array<i64: 1, 1, 1>}]} {
    %c0 = arith.constant 0 : index
    %c0_0 = arith.constant 0 : index
    %0 = vector.load %arg1[%c0, %c0_0] : memref<128x16xf32, #tpu.memory_space<vmem>>, vector<128x16xf32>
    %c0_1 = arith.constant 0 : index
    %c0_2 = arith.constant 0 : index
    %1 = vector.load %arg2[%c0_1, %c0_2] : memref<128x1xi32, #tpu.memory_space<vmem>>, vector<128x1xi32>
    %cst = arith.constant dense<0xFF800000> : vector<128xf32>
    %2 = vector.multi_reduction <maximumf>, %0, %cst [1] : vector<128x16xf32> to vector<128xf32>
    %3 = vector.shape_cast %2 : vector<128xf32> to vector<128x1xf32>
    %4 = vector.broadcast %3 : vector<128x1xf32> to vector<128x16xf32>
    %5 = arith.subf %0, %4 : vector<128x16xf32>
    %6 = math.exp %5 : vector<128x16xf32>
    %cst_3 = arith.constant dense<0.000000e+00> : vector<128xf32>
    %7 = vector.multi_reduction <add>, %6, %cst_3 [1] : vector<128x16xf32> to vector<128xf32>
    %8 = vector.shape_cast %7 : vector<128xf32> to vector<128x1xf32>
    %9 = tpu.iota {dimensions = array<i32: 1>} : vector<128x16xi32>
    %10 = vector.broadcast %1 : vector<128x1xi32> to vector<128x16xi32>
    %11 = arith.cmpi eq, %9, %10 : vector<128x16xi32>
    %12 = arith.extui %11 : vector<128x16xi1> to vector<128x16xi32>
    %13 = arith.sitofp %12 : vector<128x16xi32> to vector<128x16xf32>
    %14 = arith.mulf %6, %13 : vector<128x16xf32>
    %cst_4 = arith.constant dense<0.000000e+00> : vector<128xf32>
    %15 = vector.multi_reduction <add>, %14, %cst_4 [1] : vector<128x16xf32> to vector<128xf32>
    %16 = vector.shape_cast %15 : vector<128xf32> to vector<128x1xf32>
    %17 = arith.divf %16, %8 : vector<128x1xf32>
    %cst_5 = arith.constant 1.000000e+00 : f32
    %18 = vector.broadcast %cst_5 : f32 to vector<128x1xf32>
    %19 = arith.mulf %18, %17 : vector<128x1xf32>
    %cst_6 = arith.constant 1.000000e+00 : f32
    %20 = vector.broadcast %cst_6 : f32 to vector<128x1xf32>
    %21 = arith.subf %20, %19 : vector<128x1xf32>
    %cst_7 = arith.constant 1.000000e+00 : f32
    %22 = vector.broadcast %cst_7 : f32 to vector<128x1xf32>
    %23 = arith.subf %22, %19 : vector<128x1xf32>
    %cst_8 = arith.constant 0.000000e+00 : f32
    %24 = vector.broadcast %cst_8 : f32 to vector<128x1xf32>
    %25 = arith.addf %19, %24 : vector<128x1xf32>
    %cst_9 = arith.constant 5.000000e-01 : f32
    %26 = vector.broadcast %cst_9 : f32 to vector<128x1xf32>
    %27 = arith.mulf %26, %21 : vector<128x1xf32>
    %28 = arith.addf %19, %27 : vector<128x1xf32>
    %cst_10 = arith.constant 5.000000e-01 : f32
    %29 = vector.broadcast %cst_10 : f32 to vector<128x1xf32>
    %30 = arith.mulf %29, %23 : vector<128x1xf32>
    %31 = arith.addf %28, %30 : vector<128x1xf32>
    %cst_11 = arith.constant 9.99999997E-7 : f32
    %32 = vector.broadcast %cst_11 : f32 to vector<128x1xf32>
    %33 = arith.addf %31, %32 : vector<128x1xf32>
    %cst_12 = arith.constant 0.000000e+00 : f32
    %34 = vector.broadcast %cst_12 : f32 to vector<128x1xf32>
    %35 = arith.addf %33, %34 : vector<128x1xf32>
    %36 = arith.divf %25, %35 : vector<128x1xf32>
    %cst_13 = arith.constant 1.000000e+00 : f32
    %37 = vector.broadcast %cst_13 : f32 to vector<128x1xf32>
    %38 = arith.subf %37, %36 : vector<128x1xf32>
    %c-100_i32 = arith.constant -100 : i32
    %39 = vector.broadcast %c-100_i32 : i32 to vector<128x1xi32>
    %40 = arith.cmpi ne, %1, %39 : vector<128x1xi32>
    %41 = arith.extui %40 : vector<128x1xi1> to vector<128x1xi32>
    %42 = arith.sitofp %41 : vector<128x1xi32> to vector<128x1xf32>
    %43 = arith.mulf %38, %42 : vector<128x1xf32>
    %44 = vector.shape_cast %43 : vector<128x1xf32> to vector<1x128x1xf32>
    %cst_14 = arith.constant dense<0.000000e+00> : vector<1xf32>
    %45 = vector.multi_reduction <add>, %44, %cst_14 [1, 2] : vector<1x128x1xf32> to vector<1xf32>
    %46 = vector.shape_cast %45 : vector<1xf32> to vector<1x1x1xf32>
    %47 = vector.extract %46[0, 0, 0] : f32 from vector<1x1x1xf32>
    %48 = vector.broadcast %47 : f32 to vector<1x1x1xf32>
    %c0_15 = arith.constant 0 : index
    %c0_16 = arith.constant 0 : index
    %c0_17 = arith.constant 0 : index
    %49 = vector.load %arg3[%c0_15, %c0_16, %c0_17] : memref<1x1x1xf32, #tpu.memory_space<vmem>>, vector<1x1x1xf32>
    tpu.vector_store %arg3[%c0_15, %c0_16, %c0_17], %48 {strides = array<i32>} : memref<1x1x1xf32, #tpu.memory_space<vmem>>, vector<1x1x1xf32>,
    %50 = vector.shape_cast %42 : vector<128x1xf32> to vector<1x128x1xf32>
    %cst_18 = arith.constant dense<0.000000e+00> : vector<1xf32>
    %51 = vector.multi_reduction <add>, %50, %cst_18 [1, 2] : vector<1x128x1xf32> to vector<1xf32>
    %52 = vector.shape_cast %51 : vector<1xf32> to vector<1x1x1xf32>
    %53 = vector.extract %52[0, 0, 0] : f32 from vector<1x1x1xf32>
    %54 = vector.broadcast %53 : f32 to vector<1x1x1xf32>
    %c0_19 = arith.constant 0 : index
    %c0_20 = arith.constant 0 : index
    %c0_21 = arith.constant 0 : index
    %55 = vector.load %arg4[%c0_19, %c0_20, %c0_21] : memref<1x1x1xf32, #tpu.memory_space<vmem>>, vector<1x1x1xf32>
    tpu.vector_store %arg4[%c0_19, %c0_20, %c0_21], %54 {strides = array<i32>} : memref<1x1x1xf32, #tpu.memory_space<vmem>>, vector<1x1x1xf32>,
    return
  }
  func.func @transform_0(%arg0: i32) -> (i32, i32) {
    %c0_i32 = arith.constant 0 : i32
    %c0_i32_0 = arith.constant 0 : i32
    return %arg0, %c0_i32 : i32, i32
  }
  func.func @transform_1(%arg0: i32) -> (i32, i32) {
    %c0_i32 = arith.constant 0 : i32
    %c0_i32_0 = arith.constant 0 : i32
    return %arg0, %c0_i32 : i32, i32
  }
  func.func @transform_2(%arg0: i32) -> (i32, i32, i32) {
    %c0_i32 = arith.constant 0 : i32
    %c0_i32_0 = arith.constant 0 : i32
    %c0_i32_1 = arith.constant 0 : i32
    return %arg0, %c0_i32, %c0_i32_0 : i32, i32, i32
  }
  func.func @transform_3(%arg0: i32) -> (i32, i32, i32) {
    %c0_i32 = arith.constant 0 : i32
    %c0_i32_0 = arith.constant 0 : i32
    %c0_i32_1 = arith.constant 0 : i32
    return %arg0, %c0_i32, %c0_i32_0 : i32, i32, i32
  }
}

</mosaic_0001>

<llo_original>
// kernel: tpu_custom_call.1
$region0: #{tpu_custom_call.1}
  #allocation0 [shape = 'u32[]', space=smem, size = 0x4, offset = 0x4, fixed_abs, tag = 'smem constant byte address 0x4 - core index']
  #allocation1 [shape = 'u32[72,128]{1,0:T(1,128)}', space=vmem, size = 0x9000, scoped, tag = 'internal scratch']
  %s0 = inlined_call_operand.vmem [shape: f32[128,16], index: 0, kind: input, shape index: {}]
  %s1 = inlined_call_operand.vmem [shape: s32[128,1], index: 1, kind: input, shape index: {}]
  %s2 = inlined_call_operand.hbm [shape: f32[1,1,1], index: 2, kind: output, shape index: {0}]
  %s3 = inlined_call_operand.hbm [shape: f32[1,1,1], index: 3, kind: output, shape index: {1}]
  %4 = xla_tuple %s2, %s3
  %s5 = sld [smem:[#allocation0]]
  $region26: #{tpu_custom_call.1} parent=0
    _
  %s7 = ssub.s32 1, %s5
  %s8 = scalar_select 0, %s7, %s5
  $region1: #{tpu_custom_call.1} parent=0
    #allocation2 [shape = 'u8[512]{0}', space=vmem, size = 0x400, scoped, tag = 'output window, operand 0, single buffered']
    #allocation3 [shape = 's32[1]{0}', space=sflag, size = 0x4, scoped, tag = 'scoped memory for tpu_custom_call.1']
    #allocation4 [shape = 'u8[512]{0}', space=vmem, size = 0x400, scoped, tag = 'output window, operand 1, single buffered']
    #allocation5 [shape = 's32[1]{0}', space=sflag, size = 0x4, scoped, tag = 'scoped memory for tpu_custom_call.1']
    %9 = vsyncpa [#allocation3], 0
    %10 = vsyncpa [#allocation5], 0
    // Predicated region
    $region2: #{tpu_custom_call.1} parent=1 // pred_check
      _
    $region3: #{tpu_custom_call.1} parent=1 // pred_check_branch
      %12 = sbr.rel (0) target = $region5
    $region4: #{tpu_custom_call.1} parent=1 // pred_region
      _
    $region5: #{tpu_custom_call.1} parent=1 // pred_fallthru
      _
    // Predicated region
    $region6: #{tpu_custom_call.1} parent=1 // pred_check
      _
    $region7: #{tpu_custom_call.1} parent=1 // pred_check_branch
      %14 = sbr.rel (0) target = $region9
    $region8: #{tpu_custom_call.1} parent=1 // pred_region
      _
    $region9: #{tpu_custom_call.1} parent=1 // pred_fallthru
      _
    %v15 = vld [vmem:[%s0] sm:$0xff]
    %v16 = vld [vmem:[%s0 + $0x8] sm:$0xff]
    %v17 = vld [vmem:[%s0 + $0x10] sm:$0xff]
    %v18 = vld [vmem:[%s0 + $0x18] sm:$0xff]
    %v19 = vld [vmem:[%s0 + $0x20] sm:$0xff]
    %v20 = vld [vmem:[%s0 + $0x28] sm:$0xff]
    %v21 = vld [vmem:[%s0 + $0x30] sm:$0xff]
    %v22 = vld [vmem:[%s0 + $0x38] sm:$0xff]
    %v23 = vld [vmem:[%s0 + $0x40] sm:$0xff]
    %v24 = vld [vmem:[%s0 + $0x48] sm:$0xff]
    %v25 = vld [vmem:[%s0 + $0x50] sm:$0xff]
    %v26 = vld [vmem:[%s0 + $0x58] sm:$0xff]
    %v27 = vld [vmem:[%s0 + $0x60] sm:$0xff]
    %v28 = vld [vmem:[%s0 + $0x68] sm:$0xff]
    %v29 = vld [vmem:[%s0 + $0x70] sm:$0xff]
    %v30 = vld [vmem:[%s0 + $0x78] sm:$0xff]
    %v31 = vld [vmem:[%s1] sm:$0xff]
    %v32 = vld [vmem:[%s1 + $0x8] sm:$0xff]
    %v33 = vld [vmem:[%s1 + $0x10] sm:$0xff]
    %v34 = vld [vmem:[%s1 + $0x18] sm:$0xff]
    %v35 = vld [vmem:[%s1 + $0x20] sm:$0xff]
    %v36 = vld [vmem:[%s1 + $0x28] sm:$0xff]
    %v37 = vld [vmem:[%s1 + $0x30] sm:$0xff]
    %v38 = vld [vmem:[%s1 + $0x38] sm:$0xff]
    %v39 = vld [vmem:[%s1 + $0x40] sm:$0xff]
    %v40 = vld [vmem:[%s1 + $0x48] sm:$0xff]
    %v41 = vld [vmem:[%s1 + $0x50] sm:$0xff]
    %v42 = vld [vmem:[%s1 + $0x58] sm:$0xff]
    %v43 = vld [vmem:[%s1 + $0x60] sm:$0xff]
    %v44 = vld [vmem:[%s1 + $0x68] sm:$0xff]
    %v45 = vld [vmem:[%s1 + $0x70] sm:$0xff]
    %v46 = vld [vmem:[%s1 + $0x78] sm:$0xff]
    %vm47 = vcmask 130048
    %v48 = vsel %vm47, %v15, -inf
    %49 = vmax.xlane.f32.xlu0 %v48
    %v50 = vpop.xlane.xlu0 %49
    %v51 = vsel %vm47, %v16, -inf
    %52 = vmax.xlane.f32.xlu0 %v51
    %v53 = vpop.xlane.xlu0 %52
    %v54 = vsel %vm47, %v17, -inf
    %55 = vmax.xlane.f32.xlu0 %v54
    %v56 = vpop.xlane.xlu0 %55
    %v57 = vsel %vm47, %v18, -inf
    %58 = vmax.xlane.f32.xlu0 %v57
    %v59 = vpop.xlane.xlu0 %58
    %v60 = vsel %vm47, %v19, -inf
    %61 = vmax.xlane.f32.xlu0 %v60
    %v62 = vpop.xlane.xlu0 %61
    %v63 = vsel %vm47, %v20, -inf
    %64 = vmax.xlane.f32.xlu0 %v63
    %v65 = vpop.xlane.xlu0 %64
    %v66 = vsel %vm47, %v21, -inf
    %67 = vmax.xlane.f32.xlu0 %v66
    %v68 = vpop.xlane.xlu0 %67
    %v69 = vsel %vm47, %v22, -inf
    %70 = vmax.xlane.f32.xlu0 %v69
    %v71 = vpop.xlane.xlu0 %70
    %v72 = vsel %vm47, %v23, -inf
    %73 = vmax.xlane.f32.xlu0 %v72
    %v74 = vpop.xlane.xlu0 %73
    %v75 = vsel %vm47, %v24, -inf
    %76 = vmax.xlane.f32.xlu0 %v75
    %v77 = vpop.xlane.xlu0 %76
    %v78 = vsel %vm47, %v25, -inf
    %79 = vmax.xlane.f32.xlu0 %v78
    %v80 = vpop.xlane.xlu0 %79
    %v81 = vsel %vm47, %v26, -inf
    %82 = vmax.xlane.f32.xlu0 %v81
    %v83 = vpop.xlane.xlu0 %82
    %v84 = vsel %vm47, %v27, -inf
    %85 = vmax.xlane.f32.xlu0 %v84
    %v86 = vpop.xlane.xlu0 %85
    %v87 = vsel %vm47, %v28, -inf
    %88 = vmax.xlane.f32.xlu0 %v87
    %v89 = vpop.xlane.xlu0 %88
    %v90 = vsel %vm47, %v29, -inf
    %91 = vmax.xlane.f32.xlu0 %v90
    %v92 = vpop.xlane.xlu0 %91
    %v93 = vsel %vm47, %v30, -inf
    %94 = vmax.xlane.f32.xlu0 %v93
    %v95 = vpop.xlane.xlu0 %94
    %v96 = vsub.f32 %v15, %v50
    %v97 = vsub.f32 %v16, %v53
    %v98 = vsub.f32 %v17, %v56
    %v99 = vsub.f32 %v18, %v59
    %v100 = vsub.f32 %v19, %v62
    %v101 = vsub.f32 %v20, %v65
    %v102 = vsub.f32 %v21, %v68
    %v103 = vsub.f32 %v22, %v71
    %v104 = vsub.f32 %v23, %v74
    %v105 = vsub.f32 %v24, %v77
    %v106 = vsub.f32 %v25, %v80
    %v107 = vsub.f32 %v26, %v83
    %v108 = vsub.f32 %v27, %v86
    %v109 = vsub.f32 %v28, %v89
    %v110 = vsub.f32 %v29, %v92
    %v111 = vsub.f32 %v30, %v95
    %v112 = vmul.f32 %v96, 1.442695
    %v113 = vpow.pop %v112
    %v114 = vmul.f32 %v97, 1.442695
    %v115 = vpow.pop %v114
    %v116 = vmul.f32 %v98, 1.442695
    %v117 = vpow.pop %v116
    %v118 = vmul.f32 %v99, 1.442695
    %v119 = vpow.pop %v118
    %v120 = vmul.f32 %v100, 1.442695
    %v121 = vpow.pop %v120
    %v122 = vmul.f32 %v101, 1.442695
    %v123 = vpow.pop %v122
    %v124 = vmul.f32 %v102, 1.442695
    %v125 = vpow.pop %v124
    %v126 = vmul.f32 %v103, 1.442695
    %v127 = vpow.pop %v126
    %v128 = vmul.f32 %v104, 1.442695
    %v129 = vpow.pop %v128
    %v130 = vmul.f32 %v105, 1.442695
    %v131 = vpow.pop %v130
    %v132 = vmul.f32 %v106, 1.442695
    %v133 = vpow.pop %v132
    %v134 = vmul.f32 %v107, 1.442695
    %v135 = vpow.pop %v134
    %v136 = vmul.f32 %v108, 1.442695
    %v137 = vpow.pop %v136
    %v138 = vmul.f32 %v109, 1.442695
    %v139 = vpow.pop %v138
    %v140 = vmul.f32 %v110, 1.442695
    %v141 = vpow.pop %v140
    %v142 = vmul.f32 %v111, 1.442695
    %v143 = vpow.pop %v142
    %v144 = vsel %vm47, %v113, 0.0
    %145 = vadd.xlane.f32.xlu0 %v144
    %v146 = vpop.xlane.xlu0 %145
    %v147 = vsel %vm47, %v115, 0.0
    %148 = vadd.xlane.f32.xlu0 %v147
    %v149 = vpop.xlane.xlu0 %148
    %v150 = vsel %vm47, %v117, 0.0
    %151 = vadd.xlane.f32.xlu0 %v150
    %v152 = vpop.xlane.xlu0 %151
    %v153 = vsel %vm47, %v119, 0.0
    %154 = vadd.xlane.f32.xlu0 %v153
    %v155 = vpop.xlane.xlu0 %154
    %v156 = vsel %vm47, %v121, 0.0
    %157 = vadd.xlane.f32.xlu0 %v156
    %v158 = vpop.xlane.xlu0 %157
    %v159 = vsel %vm47, %v123, 0.0
    %160 = vadd.xlane.f32.xlu0 %v159
    %v161 = vpop.xlane.xlu0 %160
    %v162 = vsel %vm47, %v125, 0.0
    %163 = vadd.xlane.f32.xlu0 %v162
    %v164 = vpop.xlane.xlu0 %163
    %v165 = vsel %vm47, %v127, 0.0
    %166 = vadd.xlane.f32.xlu0 %v165
    %v167 = vpop.xlane.xlu0 %166
    %v168 = vsel %vm47, %v129, 0.0
    %169 = vadd.xlane.f32.xlu0 %v168
    %v170 = vpop.xlane.xlu0 %169
    %v171 = vsel %vm47, %v131, 0.0
    %172 = vadd.xlane.f32.xlu0 %v171
    %v173 = vpop.xlane.xlu0 %172
    %v174 = vsel %vm47, %v133, 0.0
    %175 = vadd.xlane.f32.xlu0 %v174
    %v176 = vpop.xlane.xlu0 %175
    %v177 = vsel %vm47, %v135, 0.0
    %178 = vadd.xlane.f32.xlu0 %v177
    %v179 = vpop.xlane.xlu0 %178
    %v180 = vsel %vm47, %v137, 0.0
    %181 = vadd.xlane.f32.xlu0 %v180
    %v182 = vpop.xlane.xlu0 %181
    %v183 = vsel %vm47, %v139, 0.0
    %184 = vadd.xlane.f32.xlu0 %v183
    %v185 = vpop.xlane.xlu0 %184
    %v186 = vsel %vm47, %v141, 0.0
    %187 = vadd.xlane.f32.xlu0 %v186
    %v188 = vpop.xlane.xlu0 %187
    %v189 = vsel %vm47, %v143, 0.0
    %190 = vadd.xlane.f32.xlu0 %v189
    %v191 = vpop.xlane.xlu0 %190
    %v192 = vlaneseq
    %v193 = vand.u32 %v192, 127
    %194 = vset.pattern.permute.xlu0 0
    %195 = vperm.xlu0 %194, %v31
    %v196 = vpop.permute.xlu0 %195
    %197 = vset.pattern.permute.xlu0 0
    %198 = vperm.xlu0 %197, %v32
    %v199 = vpop.permute.xlu0 %198
    %200 = vset.pattern.permute.xlu0 0
    %201 = vperm.xlu0 %200, %v33
    %v202 = vpop.permute.xlu0 %201
    %203 = vset.pattern.permute.xlu0 0
    %204 = vperm.xlu0 %203, %v34
    %v205 = vpop.permute.xlu0 %204
    %206 = vset.pattern.permute.xlu0 0
    %207 = vperm.xlu0 %206, %v35
    %v208 = vpop.permute.xlu0 %207
    %209 = vset.pattern.permute.xlu0 0
    %210 = vperm.xlu0 %209, %v36
    %v211 = vpop.permute.xlu0 %210
    %212 = vset.pattern.permute.xlu0 0
    %213 = vperm.xlu0 %212, %v37
    %v214 = vpop.permute.xlu0 %213
    %215 = vset.pattern.permute.xlu0 0
    %216 = vperm.xlu0 %215, %v38
    %v217 = vpop.permute.xlu0 %216
    %218 = vset.pattern.permute.xlu0 0
    %219 = vperm.xlu0 %218, %v39
    %v220 = vpop.permute.xlu0 %219
    %221 = vset.pattern.permute.xlu0 0
    %222 = vperm.xlu0 %221, %v40
    %v223 = vpop.permute.xlu0 %222
    %224 = vset.pattern.permute.xlu0 0
    %225 = vperm.xlu0 %224, %v41
    %v226 = vpop.permute.xlu0 %225
    %227 = vset.pattern.permute.xlu0 0
    %228 = vperm.xlu0 %227, %v42
    %v229 = vpop.permute.xlu0 %228
    %230 = vset.pattern.permute.xlu0 0
    %231 = vperm.xlu0 %230, %v43
    %v232 = vpop.permute.xlu0 %231
    %233 = vset.pattern.permute.xlu0 0
    %234 = vperm.xlu0 %233, %v44
    %v235 = vpop.permute.xlu0 %234
    %236 = vset.pattern.permute.xlu0 0
    %237 = vperm.xlu0 %236, %v45
    %v238 = vpop.permute.xlu0 %237
    %239 = vset.pattern.permute.xlu0 0
    %240 = vperm.xlu0 %239, %v46
    %v241 = vpop.permute.xlu0 %240
    %vm242 = vcmp.eq.s32.totalorder %v193, %v196
    %vm243 = vcmp.eq.s32.totalorder %v193, %v199
    %vm244 = vcmp.eq.s32.totalorder %v193, %v202
    %vm245 = vcmp.eq.s32.totalorder %v193, %v205
    %vm246 = vcmp.eq.s32.totalorder %v193, %v208
    %vm247 = vcmp.eq.s32.totalorder %v193, %v211
    %vm248 = vcmp.eq.s32.totalorder %v193, %v214
    %vm249 = vcmp.eq.s32.totalorder %v193, %v217
    %vm250 = vcmp.eq.s32.totalorder %v193, %v220
    %vm251 = vcmp.eq.s32.totalorder %v193, %v223
    %vm252 = vcmp.eq.s32.totalorder %v193, %v226
    %vm253 = vcmp.eq.s32.totalorder %v193, %v229
    %vm254 = vcmp.eq.s32.totalorder %v193, %v232
    %vm255 = vcmp.eq.s32.totalorder %v193, %v235
    %vm256 = vcmp.eq.s32.totalorder %v193, %v238
    %vm257 = vcmp.eq.s32.totalorder %v193, %v241
    %v258 = vsel %vm242, 1, 0
    %v259 = vsel %vm243, 1, 0
    %v260 = vsel %vm244, 1, 0
    %v261 = vsel %vm245, 1, 0
    %v262 = vsel %vm246, 1, 0
    %v263 = vsel %vm247, 1, 0
    %v264 = vsel %vm248, 1, 0
    %v265 = vsel %vm249, 1, 0
    %v266 = vsel %vm250, 1, 0
    %v267 = vsel %vm251, 1, 0
    %v268 = vsel %vm252, 1, 0
    %v269 = vsel %vm253, 1, 0
    %v270 = vsel %vm254, 1, 0
    %v271 = vsel %vm255, 1, 0
    %v272 = vsel %vm256, 1, 0
    %v273 = vsel %vm257, 1, 0
    %v274 = vcvt.s32.f32 %v258
    %v275 = vcvt.s32.f32 %v259
    %v276 = vcvt.s32.f32 %v260
    %v277 = vcvt.s32.f32 %v261
    %v278 = vcvt.s32.f32 %v262
    %v279 = vcvt.s32.f32 %v263
    %v280 = vcvt.s32.f32 %v264
    %v281 = vcvt.s32.f32 %v265
    %v282 = vcvt.s32.f32 %v266
    %v283 = vcvt.s32.f32 %v267
    %v284 = vcvt.s32.f32 %v268
    %v285 = vcvt.s32.f32 %v269
    %v286 = vcvt.s32.f32 %v270
    %v287 = vcvt.s32.f32 %v271
    %v288 = vcvt.s32.f32 %v272
    %v289 = vcvt.s32.f32 %v273
    %v290 = vmul.f32 %v113, %v274
    %v291 = vmul.f32 %v115, %v275
    %v292 = vmul.f32 %v117, %v276
    %v293 = vmul.f32 %v119, %v277
    %v294 = vmul.f32 %v121, %v278
    %v295 = vmul.f32 %v123, %v279
    %v296 = vmul.f32 %v125, %v280
    %v297 = vmul.f32 %v127, %v281
    %v298 = vmul.f32 %v129, %v282
    %v299 = vmul.f32 %v131, %v283
    %v300 = vmul.f32 %v133, %v284
    %v301 = vmul.f32 %v135, %v285
    %v302 = vmul.f32 %v137, %v286
    %v303 = vmul.f32 %v139, %v287
    %v304 = vmul.f32 %v141, %v288
    %v305 = vmul.f32 %v143, %v289
    %v306 = vsel %vm47, %v290, 0.0
    %307 = vadd.xlane.f32.xlu0 %v306
    %v308 = vpop.xlane.xlu0 %307
    %v309 = vsel %vm47, %v291, 0.0
    %310 = vadd.xlane.f32.xlu0 %v309
    %v311 = vpop.xlane.xlu0 %310
    %v312 = vsel %vm47, %v292, 0.0
    %313 = vadd.xlane.f32.xlu0 %v312
    %v314 = vpop.xlane.xlu0 %313
    %v315 = vsel %vm47, %v293, 0.0
    %316 = vadd.xlane.f32.xlu0 %v315
    %v317 = vpop.xlane.xlu0 %316
    %v318 = vsel %vm47, %v294, 0.0
    %319 = vadd.xlane.f32.xlu0 %v318
    %v320 = vpop.xlane.xlu0 %319
    %v321 = vsel %vm47, %v295, 0.0
    %322 = vadd.xlane.f32.xlu0 %v321
    %v323 = vpop.xlane.xlu0 %322
    %v324 = vsel %vm47, %v296, 0.0
    %325 = vadd.xlane.f32.xlu0 %v324
    %v326 = vpop.xlane.xlu0 %325
    %v327 = vsel %vm47, %v297, 0.0
    %328 = vadd.xlane.f32.xlu0 %v327
    %v329 = vpop.xlane.xlu0 %328
    %v330 = vsel %vm47, %v298, 0.0
    %331 = vadd.xlane.f32.xlu0 %v330
    %v332 = vpop.xlane.xlu0 %331
    %v333 = vsel %vm47, %v299, 0.0
    %334 = vadd.xlane.f32.xlu0 %v333
    %v335 = vpop.xlane.xlu0 %334
    %v336 = vsel %vm47, %v300, 0.0
    %337 = vadd.xlane.f32.xlu0 %v336
    %v338 = vpop.xlane.xlu0 %337
    %v339 = vsel %vm47, %v301, 0.0
    %340 = vadd.xlane.f32.xlu0 %v339
    %v341 = vpop.xlane.xlu0 %340
    %v342 = vsel %vm47, %v302, 0.0
    %343 = vadd.xlane.f32.xlu0 %v342
    %v344 = vpop.xlane.xlu0 %343
    %v345 = vsel %vm47, %v303, 0.0
    %346 = vadd.xlane.f32.xlu0 %v345
    %v347 = vpop.xlane.xlu0 %346
    %v348 = vsel %vm47, %v304, 0.0
    %349 = vadd.xlane.f32.xlu0 %v348
    %v350 = vpop.xlane.xlu0 %349
    %v351 = vsel %vm47, %v305, 0.0
    %352 = vadd.xlane.f32.xlu0 %v351
    %v353 = vpop.xlane.xlu0 %352
    %v354 = vrcp.pop %v146
    %v355 = vmul.f32 %v146, %v354
    %v356 = vsub.f32 1.0, %v355
    %v357 = vmul.f32 %v354, %v356
    %v358 = vadd.f32 %v354, %v357
    %vm359 = vweird.f32 %v146
    %vm360 = vweird.f32 %v354
    %vm361 = vmor %vm359, %vm360
    %v362 = vsel %vm361, %v354, %v358
    %v363 = vand.u32 2147483647, %v146
    %vm364 = vcmp.eq.f32.partialorder %v363, 8.507059e+37
    %v365 = vand.u32 %v146, 2147483648
    %v366 = vor.u32 1.1754944e-38, %v365
    %v367 = vsel %vm364, %v366, %v362
    %v368 = vmul.f32 %v308, %v367
    %v369 = vrcp.pop %v149
    %v370 = vmul.f32 %v149, %v369
    %v371 = vsub.f32 1.0, %v370
    %v372 = vmul.f32 %v369, %v371
    %v373 = vadd.f32 %v369, %v372
    %vm374 = vweird.f32 %v149
    %vm375 = vweird.f32 %v369
    %vm376 = vmor %vm374, %vm375
    %v377 = vsel %vm376, %v369, %v373
    %v378 = vand.u32 2147483647, %v149
    %vm379 = vcmp.eq.f32.partialorder %v378, 8.507059e+37
    %v380 = vand.u32 %v149, 2147483648
    %v381 = vor.u32 1.1754944e-38, %v380
    %v382 = vsel %vm379, %v381, %v377
    %v383 = vmul.f32 %v311, %v382
    %v384 = vrcp.pop %v152
    %v385 = vmul.f32 %v152, %v384
    %v386 = vsub.f32 1.0, %v385
    %v387 = vmul.f32 %v384, %v386
    %v388 = vadd.f32 %v384, %v387
    %vm389 = vweird.f32 %v152
    %vm390 = vweird.f32 %v384
    %vm391 = vmor %vm389, %vm390
    %v392 = vsel %vm391, %v384, %v388
    %v393 = vand.u32 2147483647, %v152
    %vm394 = vcmp.eq.f32.partialorder %v393, 8.507059e+37
    %v395 = vand.u32 %v152, 2147483648
    %v396 = vor.u32 1.1754944e-38, %v395
    %v397 = vsel %vm394, %v396, %v392
    %v398 = vmul.f32 %v314, %v397
    %v399 = vrcp.pop %v155
    %v400 = vmul.f32 %v155, %v399
    %v401 = vsub.f32 1.0, %v400
    %v402 = vmul.f32 %v399, %v401
    %v403 = vadd.f32 %v399, %v402
    %vm404 = vweird.f32 %v155
    %vm405 = vweird.f32 %v399
    %vm406 = vmor %vm404, %vm405
    %v407 = vsel %vm406, %v399, %v403
    %v408 = vand.u32 2147483647, %v155
    %vm409 = vcmp.eq.f32.partialorder %v408, 8.507059e+37
    %v410 = vand.u32 %v155, 2147483648
    %v411 = vor.u32 1.1754944e-38, %v410
    %v412 = vsel %vm409, %v411, %v407
    %v413 = vmul.f32 %v317, %v412
    %v414 = vrcp.pop %v158
    %v415 = vmul.f32 %v158, %v414
    %v416 = vsub.f32 1.0, %v415
    %v417 = vmul.f32 %v414, %v416
    %v418 = vadd.f32 %v414, %v417
    %vm419 = vweird.f32 %v158
    %vm420 = vweird.f32 %v414
    %vm421 = vmor %vm419, %vm420
    %v422 = vsel %vm421, %v414, %v418
    %v423 = vand.u32 2147483647, %v158
    %vm424 = vcmp.eq.f32.partialorder %v423, 8.507059e+37
    %v425 = vand.u32 %v158, 2147483648
    %v426 = vor.u32 1.1754944e-38, %v425
    %v427 = vsel %vm424, %v426, %v422
    %v428 = vmul.f32 %v320, %v427
    %v429 = vrcp.pop %v161
    %v430 = vmul.f32 %v161, %v429
    %v431 = vsub.f32 1.0, %v430
    %v432 = vmul.f32 %v429, %v431
    %v433 = vadd.f32 %v429, %v432
    %vm434 = vweird.f32 %v161
    %vm435 = vweird.f32 %v429
    %vm436 = vmor %vm434, %vm435
    %v437 = vsel %vm436, %v429, %v433
    %v438 = vand.u32 2147483647, %v161
    %vm439 = vcmp.eq.f32.partialorder %v438, 8.507059e+37
    %v440 = vand.u32 %v161, 2147483648
    %v441 = vor.u32 1.1754944e-38, %v440
    %v442 = vsel %vm439, %v441, %v437
    %v443 = vmul.f32 %v323, %v442
    %v444 = vrcp.pop %v164
    %v445 = vmul.f32 %v164, %v444
    %v446 = vsub.f32 1.0, %v445
    %v447 = vmul.f32 %v444, %v446
    %v448 = vadd.f32 %v444, %v447
    %vm449 = vweird.f32 %v164
    %vm450 = vweird.f32 %v444
    %vm451 = vmor %vm449, %vm450
    %v452 = vsel %vm451, %v444, %v448
    %v453 = vand.u32 2147483647, %v164
    %vm454 = vcmp.eq.f32.partialorder %v453, 8.507059e+37
    %v455 = vand.u32 %v164, 2147483648
    %v456 = vor.u32 1.1754944e-38, %v455
    %v457 = vsel %vm454, %v456, %v452
    %v458 = vmul.f32 %v326, %v457
    %v459 = vrcp.pop %v167
    %v460 = vmul.f32 %v167, %v459
    %v461 = vsub.f32 1.0, %v460
    %v462 = vmul.f32 %v459, %v461
    %v463 = vadd.f32 %v459, %v462
    %vm464 = vweird.f32 %v167
    %vm465 = vweird.f32 %v459
    %vm466 = vmor %vm464, %vm465
    %v467 = vsel %vm466, %v459, %v463
    %v468 = vand.u32 2147483647, %v167
    %vm469 = vcmp.eq.f32.partialorder %v468, 8.507059e+37
    %v470 = vand.u32 %v167, 2147483648
    %v471 = vor.u32 1.1754944e-38, %v470
    %v472 = vsel %vm469, %v471, %v467
    %v473 = vmul.f32 %v329, %v472
    %v474 = vrcp.pop %v170
    %v475 = vmul.f32 %v170, %v474
    %v476 = vsub.f32 1.0, %v475
    %v477 = vmul.f32 %v474, %v476
    %v478 = vadd.f32 %v474, %v477
    %vm479 = vweird.f32 %v170
    %vm480 = vweird.f32 %v474
    %vm481 = vmor %vm479, %vm480
    %v482 = vsel %vm481, %v474, %v478
    %v483 = vand.u32 2147483647, %v170
    %vm484 = vcmp.eq.f32.partialorder %v483, 8.507059e+37
    %v485 = vand.u32 %v170, 2147483648
    %v486 = vor.u32 1.1754944e-38, %v485
    %v487 = vsel %vm484, %v486, %v482
    %v488 = vmul.f32 %v332, %v487
    %v489 = vrcp.pop %v173
    %v490 = vmul.f32 %v173, %v489
    %v491 = vsub.f32 1.0, %v490
    %v492 = vmul.f32 %v489, %v491
    %v493 = vadd.f32 %v489, %v492
    %vm494 = vweird.f32 %v173
    %vm495 = vweird.f32 %v489
    %vm496 = vmor %vm494, %vm495
    %v497 = vsel %vm496, %v489, %v493
    %v498 = vand.u32 2147483647, %v173
    %vm499 = vcmp.eq.f32.partialorder %v498, 8.507059e+37
    %v500 = vand.u32 %v173, 2147483648
    %v501 = vor.u32 1.1754944e-38, %v500
    %v502 = vsel %vm499, %v501, %v497
    %v503 = vmul.f32 %v335, %v502
    %v504 = vrcp.pop %v176
    %v505 = vmul.f32 %v176, %v504
    %v506 = vsub.f32 1.0, %v505
    %v507 = vmul.f32 %v504, %v506
    %v508 = vadd.f32 %v504, %v507
    %vm509 = vweird.f32 %v176
    %vm510 = vweird.f32 %v504
    %vm511 = vmor %vm509, %vm510
    %v512 = vsel %vm511, %v504, %v508
    %v513 = vand.u32 2147483647, %v176
    %vm514 = vcmp.eq.f32.partialorder %v513, 8.507059e+37
    %v515 = vand.u32 %v176, 2147483648
    %v516 = vor.u32 1.1754944e-38, %v515
    %v517 = vsel %vm514, %v516, %v512
    %v518 = vmul.f32 %v338, %v517
    %v519 = vrcp.pop %v179
    %v520 = vmul.f32 %v179, %v519
    %v521 = vsub.f32 1.0, %v520
    %v522 = vmul.f32 %v519, %v521
    %v523 = vadd.f32 %v519, %v522
    %vm524 = vweird.f32 %v179
    %vm525 = vweird.f32 %v519
    %vm526 = vmor %vm524, %vm525
    %v527 = vsel %vm526, %v519, %v523
    %v528 = vand.u32 2147483647, %v179
    %vm529 = vcmp.eq.f32.partialorder %v528, 8.507059e+37
    %v530 = vand.u32 %v179, 2147483648
    %v531 = vor.u32 1.1754944e-38, %v530
    %v532 = vsel %vm529, %v531, %v527
    %v533 = vmul.f32 %v341, %v532
    %v534 = vrcp.pop %v182
    %v535 = vmul.f32 %v182, %v534
    %v536 = vsub.f32 1.0, %v535
    %v537 = vmul.f32 %v534, %v536
    %v538 = vadd.f32 %v534, %v537
    %vm539 = vweird.f32 %v182
    %vm540 = vweird.f32 %v534
    %vm541 = vmor %vm539, %vm540
    %v542 = vsel %vm541, %v534, %v538
    %v543 = vand.u32 2147483647, %v182
    %vm544 = vcmp.eq.f32.partialorder %v543, 8.507059e+37
    %v545 = vand.u32 %v182, 2147483648
    %v546 = vor.u32 1.1754944e-38, %v545
    %v547 = vsel %vm544, %v546, %v542
    %v548 = vmul.f32 %v344, %v547
    %v549 = vrcp.pop %v185
    %v550 = vmul.f32 %v185, %v549
    %v551 = vsub.f32 1.0, %v550
    %v552 = vmul.f32 %v549, %v551
    %v553 = vadd.f32 %v549, %v552
    %vm554 = vweird.f32 %v185
    %vm555 = vweird.f32 %v549
    %vm556 = vmor %vm554, %vm555
    %v557 = vsel %vm556, %v549, %v553
    %v558 = vand.u32 2147483647, %v185
    %vm559 = vcmp.eq.f32.partialorder %v558, 8.507059e+37
    %v560 = vand.u32 %v185, 2147483648
    %v561 = vor.u32 1.1754944e-38, %v560
    %v562 = vsel %vm559, %v561, %v557
    %v563 = vmul.f32 %v347, %v562
    %v564 = vrcp.pop %v188
    %v565 = vmul.f32 %v188, %v564
    %v566 = vsub.f32 1.0, %v565
    %v567 = vmul.f32 %v564, %v566
    %v568 = vadd.f32 %v564, %v567
    %vm569 = vweird.f32 %v188
    %vm570 = vweird.f32 %v564
    %vm571 = vmor %vm569, %vm570
    %v572 = vsel %vm571, %v564, %v568
    %v573 = vand.u32 2147483647, %v188
    %vm574 = vcmp.eq.f32.partialorder %v573, 8.507059e+37
    %v575 = vand.u32 %v188, 2147483648
    %v576 = vor.u32 1.1754944e-38, %v575
    %v577 = vsel %vm574, %v576, %v572
    %v578 = vmul.f32 %v350, %v577
    %v579 = vrcp.pop %v191
    %v580 = vmul.f32 %v191, %v579
    %v581 = vsub.f32 1.0, %v580
    %v582 = vmul.f32 %v579, %v581
    %v583 = vadd.f32 %v579, %v582
    %vm584 = vweird.f32 %v191
    %vm585 = vweird.f32 %v579
    %vm586 = vmor %vm584, %vm585
    %v587 = vsel %vm586, %v579, %v583
    %v588 = vand.u32 2147483647, %v191
    %vm589 = vcmp.eq.f32.partialorder %v588, 8.507059e+37
    %v590 = vand.u32 %v191, 2147483648
    %v591 = vor.u32 1.1754944e-38, %v590
    %v592 = vsel %vm589, %v591, %v587
    %v593 = vmul.f32 %v353, %v592
    %v594 = vsub.f32 1.0, %v368
    %v595 = vsub.f32 1.0, %v383
    %v596 = vsub.f32 1.0, %v398
    %v597 = vsub.f32 1.0, %v413
    %v598 = vsub.f32 1.0, %v428
    %v599 = vsub.f32 1.0, %v443
    %v600 = vsub.f32 1.0, %v458
    %v601 = vsub.f32 1.0, %v473
    %v602 = vsub.f32 1.0, %v488
    %v603 = vsub.f32 1.0, %v503
    %v604 = vsub.f32 1.0, %v518
    %v605 = vsub.f32 1.0, %v533
    %v606 = vsub.f32 1.0, %v548
    %v607 = vsub.f32 1.0, %v563
    %v608 = vsub.f32 1.0, %v578
    %v609 = vsub.f32 1.0, %v593
    %v610 = vadd.f32 %v368, 0.0
    %v611 = vadd.f32 %v383, 0.0
    %v612 = vadd.f32 %v398, 0.0
    %v613 = vadd.f32 %v413, 0.0
    %v614 = vadd.f32 %v428, 0.0
    %v615 = vadd.f32 %v443, 0.0
    %v616 = vadd.f32 %v458, 0.0
    %v617 = vadd.f32 %v473, 0.0
    %v618 = vadd.f32 %v488, 0.0
    %v619 = vadd.f32 %v503, 0.0
    %v620 = vadd.f32 %v518, 0.0
    %v621 = vadd.f32 %v533, 0.0
    %v622 = vadd.f32 %v548, 0.0
    %v623 = vadd.f32 %v563, 0.0
    %v624 = vadd.f32 %v578, 0.0
    %v625 = vadd.f32 %v593, 0.0
    %v626 = vmul.f32 %v594, 0.5
    %v627 = vmul.f32 %v595, 0.5
    %v628 = vmul.f32 %v596, 0.5
    %v629 = vmul.f32 %v597, 0.5
    %v630 = vmul.f32 %v598, 0.5
    %v631 = vmul.f32 %v599, 0.5
    %v632 = vmul.f32 %v600, 0.5
    %v633 = vmul.f32 %v601, 0.5
    %v634 = vmul.f32 %v602, 0.5
    %v635 = vmul.f32 %v603, 0.5
    %v636 = vmul.f32 %v604, 0.5
    %v637 = vmul.f32 %v605, 0.5
    %v638 = vmul.f32 %v606, 0.5
    %v639 = vmul.f32 %v607, 0.5
    %v640 = vmul.f32 %v608, 0.5
    %v641 = vmul.f32 %v609, 0.5
    %v642 = vadd.f32 %v368, %v626
    %v643 = vadd.f32 %v383, %v627
    %v644 = vadd.f32 %v398, %v628
    %v645 = vadd.f32 %v413, %v629
    %v646 = vadd.f32 %v428, %v630
    %v647 = vadd.f32 %v443, %v631
    %v648 = vadd.f32 %v458, %v632
    %v649 = vadd.f32 %v473, %v633
    %v650 = vadd.f32 %v488, %v634
    %v651 = vadd.f32 %v503, %v635
    %v652 = vadd.f32 %v518, %v636
    %v653 = vadd.f32 %v533, %v637
    %v654 = vadd.f32 %v548, %v638
    %v655 = vadd.f32 %v563, %v639
    %v656 = vadd.f32 %v578, %v640
    %v657 = vadd.f32 %v593, %v641
    %v658 = vadd.f32 %v642, %v626
    %v659 = vadd.f32 %v643, %v627
    %v660 = vadd.f32 %v644, %v628
    %v661 = vadd.f32 %v645, %v629
    %v662 = vadd.f32 %v646, %v630
    %v663 = vadd.f32 %v647, %v631
    %v664 = vadd.f32 %v648, %v632
    %v665 = vadd.f32 %v649, %v633
    %v666 = vadd.f32 %v650, %v634
    %v667 = vadd.f32 %v651, %v635
    %v668 = vadd.f32 %v652, %v636
    %v669 = vadd.f32 %v653, %v637
    %v670 = vadd.f32 %v654, %v638
    %v671 = vadd.f32 %v655, %v639
    %v672 = vadd.f32 %v656, %v640
    %v673 = vadd.f32 %v657, %v641
    %v674 = vadd.f32 %v658, 1e-06
    %v675 = vadd.f32 %v659, 1e-06
    %v676 = vadd.f32 %v660, 1e-06
    %v677 = vadd.f32 %v661, 1e-06
    %v678 = vadd.f32 %v662, 1e-06
    %v679 = vadd.f32 %v663, 1e-06
    %v680 = vadd.f32 %v664, 1e-06
    %v681 = vadd.f32 %v665, 1e-06
    %v682 = vadd.f32 %v666, 1e-06
    %v683 = vadd.f32 %v667, 1e-06
    %v684 = vadd.f32 %v668, 1e-06
    %v685 = vadd.f32 %v669, 1e-06
    %v686 = vadd.f32 %v670, 1e-06
    %v687 = vadd.f32 %v671, 1e-06
    %v688 = vadd.f32 %v672, 1e-06
    %v689 = vadd.f32 %v673, 1e-06
    %v690 = vadd.f32 %v674, 0.0
    %v691 = vadd.f32 %v675, 0.0
    %v692 = vadd.f32 %v676, 0.0
    %v693 = vadd.f32 %v677, 0.0
    %v694 = vadd.f32 %v678, 0.0
    %v695 = vadd.f32 %v679, 0.0
    %v696 = vadd.f32 %v680, 0.0
    %v697 = vadd.f32 %v681, 0.0
    %v698 = vadd.f32 %v682, 0.0
    %v699 = vadd.f32 %v683, 0.0
    %v700 = vadd.f32 %v684, 0.0
    %v701 = vadd.f32 %v685, 0.0
    %v702 = vadd.f32 %v686, 0.0
    %v703 = vadd.f32 %v687, 0.0
    %v704 = vadd.f32 %v688, 0.0
    %v705 = vadd.f32 %v689, 0.0
    %v706 = vrcp.pop %v690
    %v707 = vmul.f32 %v690, %v706
    %v708 = vsub.f32 1.0, %v707
    %v709 = vmul.f32 %v706, %v708
    %v710 = vadd.f32 %v706, %v709
    %vm711 = vweird.f32 %v690
    %vm712 = vweird.f32 %v706
    %vm713 = vmor %vm711, %vm712
    %v714 = vsel %vm713, %v706, %v710
    %v715 = vand.u32 2147483647, %v690
    %vm716 = vcmp.eq.f32.partialorder %v715, 8.507059e+37
    %v717 = vand.u32 %v690, 2147483648
    %v718 = vor.u32 1.1754944e-38, %v717
    %v719 = vsel %vm716, %v718, %v714
    %v720 = vmul.f32 %v610, %v719
    %v721 = vrcp.pop %v691
    %v722 = vmul.f32 %v691, %v721
    %v723 = vsub.f32 1.0, %v722
    %v724 = vmul.f32 %v721, %v723
    %v725 = vadd.f32 %v721, %v724
    %vm726 = vweird.f32 %v691
    %vm727 = vweird.f32 %v721
    %vm728 = vmor %vm726, %vm727
    %v729 = vsel %vm728, %v721, %v725
    %v730 = vand.u32 2147483647, %v691
    %vm731 = vcmp.eq.f32.partialorder %v730, 8.507059e+37
    %v732 = vand.u32 %v691, 2147483648
    %v733 = vor.u32 1.1754944e-38, %v732
    %v734 = vsel %vm731, %v733, %v729
    %v735 = vmul.f32 %v611, %v734
    %v736 = vrcp.pop %v692
    %v737 = vmul.f32 %v692, %v736
    %v738 = vsub.f32 1.0, %v737
    %v739 = vmul.f32 %v736, %v738
    %v740 = vadd.f32 %v736, %v739
    %vm741 = vweird.f32 %v692
    %vm742 = vweird.f32 %v736
    %vm743 = vmor %vm741, %vm742
    %v744 = vsel %vm743, %v736, %v740
    %v745 = vand.u32 2147483647, %v692
    %vm746 = vcmp.eq.f32.partialorder %v745, 8.507059e+37
    %v747 = vand.u32 %v692, 2147483648
    %v748 = vor.u32 1.1754944e-38, %v747
    %v749 = vsel %vm746, %v748, %v744
    %v750 = vmul.f32 %v612, %v749
    %v751 = vrcp.pop %v693
    %v752 = vmul.f32 %v693, %v751
    %v753 = vsub.f32 1.0, %v752
    %v754 = vmul.f32 %v751, %v753
    %v755 = vadd.f32 %v751, %v754
    %vm756 = vweird.f32 %v693
    %vm757 = vweird.f32 %v751
    %vm758 = vmor %vm756, %vm757
    %v759 = vsel %vm758, %v751, %v755
    %v760 = vand.u32 2147483647, %v693
    %vm761 = vcmp.eq.f32.partialorder %v760, 8.507059e+37
    %v762 = vand.u32 %v693, 2147483648
    %v763 = vor.u32 1.1754944e-38, %v762
    %v764 = vsel %vm761, %v763, %v759
    %v765 = vmul.f32 %v613, %v764
    %v766 = vrcp.pop %v694
    %v767 = vmul.f32 %v694, %v766
    %v768 = vsub.f32 1.0, %v767
    %v769 = vmul.f32 %v766, %v768
    %v770 = vadd.f32 %v766, %v769
    %vm771 = vweird.f32 %v694
    %vm772 = vweird.f32 %v766
    %vm773 = vmor %vm771, %vm772
    %v774 = vsel %vm773, %v766, %v770
    %v775 = vand.u32 2147483647, %v694
    %vm776 = vcmp.eq.f32.partialorder %v775, 8.507059e+37
    %v777 = vand.u32 %v694, 2147483648
    %v778 = vor.u32 1.1754944e-38, %v777
    %v779 = vsel %vm776, %v778, %v774
    %v780 = vmul.f32 %v614, %v779
    %v781 = vrcp.pop %v695
    %v782 = vmul.f32 %v695, %v781
    %v783 = vsub.f32 1.0, %v782
    %v784 = vmul.f32 %v781, %v783
    %v785 = vadd.f32 %v781, %v784
    %vm786 = vweird.f32 %v695
    %vm787 = vweird.f32 %v781
    %vm788 = vmor %vm786, %vm787
    %v789 = vsel %vm788, %v781, %v785
    %v790 = vand.u32 2147483647, %v695
    %vm791 = vcmp.eq.f32.partialorder %v790, 8.507059e+37
    %v792 = vand.u32 %v695, 2147483648
    %v793 = vor.u32 1.1754944e-38, %v792
    %v794 = vsel %vm791, %v793, %v789
    %v795 = vmul.f32 %v615, %v794
    %v796 = vrcp.pop %v696
    %v797 = vmul.f32 %v696, %v796
    %v798 = vsub.f32 1.0, %v797
    %v799 = vmul.f32 %v796, %v798
    %v800 = vadd.f32 %v796, %v799
    %vm801 = vweird.f32 %v696
    %vm802 = vweird.f32 %v796
    %vm803 = vmor %vm801, %vm802
    %v804 = vsel %vm803, %v796, %v800
    %v805 = vand.u32 2147483647, %v696
    %vm806 = vcmp.eq.f32.partialorder %v805, 8.507059e+37
    %v807 = vand.u32 %v696, 2147483648
    %v808 = vor.u32 1.1754944e-38, %v807
    %v809 = vsel %vm806, %v808, %v804
    %v810 = vmul.f32 %v616, %v809
    %v811 = vrcp.pop %v697
    %v812 = vmul.f32 %v697, %v811
    %v813 = vsub.f32 1.0, %v812
    %v814 = vmul.f32 %v811, %v813
    %v815 = vadd.f32 %v811, %v814
    %vm816 = vweird.f32 %v697
    %vm817 = vweird.f32 %v811
    %vm818 = vmor %vm816, %vm817
    %v819 = vsel %vm818, %v811, %v815
    %v820 = vand.u32 2147483647, %v697
    %vm821 = vcmp.eq.f32.partialorder %v820, 8.507059e+37
    %v822 = vand.u32 %v697, 2147483648
    %v823 = vor.u32 1.1754944e-38, %v822
    %v824 = vsel %vm821, %v823, %v819
    %v825 = vmul.f32 %v617, %v824
    %v826 = vrcp.pop %v698
    %v827 = vmul.f32 %v698, %v826
    %v828 = vsub.f32 1.0, %v827
    %v829 = vmul.f32 %v826, %v828
    %v830 = vadd.f32 %v826, %v829
    %vm831 = vweird.f32 %v698
    %vm832 = vweird.f32 %v826
    %vm833 = vmor %vm831, %vm832
    %v834 = vsel %vm833, %v826, %v830
    %v835 = vand.u32 2147483647, %v698
    %vm836 = vcmp.eq.f32.partialorder %v835, 8.507059e+37
    %v837 = vand.u32 %v698, 2147483648
    %v838 = vor.u32 1.1754944e-38, %v837
    %v839 = vsel %vm836, %v838, %v834
    %v840 = vmul.f32 %v618, %v839
    %v841 = vrcp.pop %v699
    %v842 = vmul.f32 %v699, %v841
    %v843 = vsub.f32 1.0, %v842
    %v844 = vmul.f32 %v841, %v843
    %v845 = vadd.f32 %v841, %v844
    %vm846 = vweird.f32 %v699
    %vm847 = vweird.f32 %v841
    %vm848 = vmor %vm846, %vm847
    %v849 = vsel %vm848, %v841, %v845
    %v850 = vand.u32 2147483647, %v699
    %vm851 = vcmp.eq.f32.partialorder %v850, 8.507059e+37
    %v852 = vand.u32 %v699, 2147483648
    %v853 = vor.u32 1.1754944e-38, %v852
    %v854 = vsel %vm851, %v853, %v849
    %v855 = vmul.f32 %v619, %v854
    %v856 = vrcp.pop %v700
    %v857 = vmul.f32 %v700, %v856
    %v858 = vsub.f32 1.0, %v857
    %v859 = vmul.f32 %v856, %v858
    %v860 = vadd.f32 %v856, %v859
    %vm861 = vweird.f32 %v700
    %vm862 = vweird.f32 %v856
    %vm863 = vmor %vm861, %vm862
    %v864 = vsel %vm863, %v856, %v860
    %v865 = vand.u32 2147483647, %v700
    %vm866 = vcmp.eq.f32.partialorder %v865, 8.507059e+37
    %v867 = vand.u32 %v700, 2147483648
    %v868 = vor.u32 1.1754944e-38, %v867
    %v869 = vsel %vm866, %v868, %v864
    %v870 = vmul.f32 %v620, %v869
    %v871 = vrcp.pop %v701
    %v872 = vmul.f32 %v701, %v871
    %v873 = vsub.f32 1.0, %v872
    %v874 = vmul.f32 %v871, %v873
    %v875 = vadd.f32 %v871, %v874
    %vm876 = vweird.f32 %v701
    %vm877 = vweird.f32 %v871
    %vm878 = vmor %vm876, %vm877
    %v879 = vsel %vm878, %v871, %v875
    %v880 = vand.u32 2147483647, %v701
    %vm881 = vcmp.eq.f32.partialorder %v880, 8.507059e+37
    %v882 = vand.u32 %v701, 2147483648
    %v883 = vor.u32 1.1754944e-38, %v882
    %v884 = vsel %vm881, %v883, %v879
    %v885 = vmul.f32 %v621, %v884
    %v886 = vrcp.pop %v702
    %v887 = vmul.f32 %v702, %v886
    %v888 = vsub.f32 1.0, %v887
    %v889 = vmul.f32 %v886, %v888
    %v890 = vadd.f32 %v886, %v889
    %vm891 = vweird.f32 %v702
    %vm892 = vweird.f32 %v886
    %vm893 = vmor %vm891, %vm892
    %v894 = vsel %vm893, %v886, %v890
    %v895 = vand.u32 2147483647, %v702
    %vm896 = vcmp.eq.f32.partialorder %v895, 8.507059e+37
    %v897 = vand.u32 %v702, 2147483648
    %v898 = vor.u32 1.1754944e-38, %v897
    %v899 = vsel %vm896, %v898, %v894
    %v900 = vmul.f32 %v622, %v899
    %v901 = vrcp.pop %v703
    %v902 = vmul.f32 %v703, %v901
    %v903 = vsub.f32 1.0, %v902
    %v904 = vmul.f32 %v901, %v903
    %v905 = vadd.f32 %v901, %v904
    %vm906 = vweird.f32 %v703
    %vm907 = vweird.f32 %v901
    %vm908 = vmor %vm906, %vm907
    %v909 = vsel %vm908, %v901, %v905
    %v910 = vand.u32 2147483647, %v703
    %vm911 = vcmp.eq.f32.partialorder %v910, 8.507059e+37
    %v912 = vand.u32 %v703, 2147483648
    %v913 = vor.u32 1.1754944e-38, %v912
    %v914 = vsel %vm911, %v913, %v909
    %v915 = vmul.f32 %v623, %v914
    %v916 = vrcp.pop %v704
    %v917 = vmul.f32 %v704, %v916
    %v918 = vsub.f32 1.0, %v917
    %v919 = vmul.f32 %v916, %v918
    %v920 = vadd.f32 %v916, %v919
    %vm921 = vweird.f32 %v704
    %vm922 = vweird.f32 %v916
    %vm923 = vmor %vm921, %vm922
    %v924 = vsel %vm923, %v916, %v920
    %v925 = vand.u32 2147483647, %v704
    %vm926 = vcmp.eq.f32.partialorder %v925, 8.507059e+37
    %v927 = vand.u32 %v704, 2147483648
    %v928 = vor.u32 1.1754944e-38, %v927
    %v929 = vsel %vm926, %v928, %v924
    %v930 = vmul.f32 %v624, %v929
    %v931 = vrcp.pop %v705
    %v932 = vmul.f32 %v705, %v931
    %v933 = vsub.f32 1.0, %v932
    %v934 = vmul.f32 %v931, %v933
    %v935 = vadd.f32 %v931, %v934
    %vm936 = vweird.f32 %v705
    %vm937 = vweird.f32 %v931
    %vm938 = vmor %vm936, %vm937
    %v939 = vsel %vm938, %v931, %v935
    %v940 = vand.u32 2147483647, %v705
    %vm941 = vcmp.eq.f32.partialorder %v940, 8.507059e+37
    %v942 = vand.u32 %v705, 2147483648
    %v943 = vor.u32 1.1754944e-38, %v942
    %v944 = vsel %vm941, %v943, %v939
    %v945 = vmul.f32 %v625, %v944
    %v946 = vsub.f32 1.0, %v720
    %v947 = vsub.f32 1.0, %v735
    %v948 = vsub.f32 1.0, %v750
    %v949 = vsub.f32 1.0, %v765
    %v950 = vsub.f32 1.0, %v780
    %v951 = vsub.f32 1.0, %v795
    %v952 = vsub.f32 1.0, %v810
    %v953 = vsub.f32 1.0, %v825
    %v954 = vsub.f32 1.0, %v840
    %v955 = vsub.f32 1.0, %v855
    %v956 = vsub.f32 1.0, %v870
    %v957 = vsub.f32 1.0, %v885
    %v958 = vsub.f32 1.0, %v900
    %v959 = vsub.f32 1.0, %v915
    %v960 = vsub.f32 1.0, %v930
    %v961 = vsub.f32 1.0, %v945
    %vm962 = vcmp.ne.s32.totalorder %v31, 4294967196
    %vm963 = vcmp.ne.s32.totalorder %v32, 4294967196
    %vm964 = vcmp.ne.s32.totalorder %v33, 4294967196
    %vm965 = vcmp.ne.s32.totalorder %v34, 4294967196
    %vm966 = vcmp.ne.s32.totalorder %v35, 4294967196
    %vm967 = vcmp.ne.s32.totalorder %v36, 4294967196
    %vm968 = vcmp.ne.s32.totalorder %v37, 4294967196
    %vm969 = vcmp.ne.s32.totalorder %v38, 4294967196
    %vm970 = vcmp.ne.s32.totalorder %v39, 4294967196
    %vm971 = vcmp.ne.s32.totalorder %v40, 4294967196
    %vm972 = vcmp.ne.s32.totalorder %v41, 4294967196
    %vm973 = vcmp.ne.s32.totalorder %v42, 4294967196
    %vm974 = vcmp.ne.s32.totalorder %v43, 4294967196
    %vm975 = vcmp.ne.s32.totalorder %v44, 4294967196
    %vm976 = vcmp.ne.s32.totalorder %v45, 4294967196
    %vm977 = vcmp.ne.s32.totalorder %v46, 4294967196
    %v978 = vsel %vm962, 1, 0
    %v979 = vsel %vm963, 1, 0
    %v980 = vsel %vm964, 1, 0
    %v981 = vsel %vm965, 1, 0
    %v982 = vsel %vm966, 1, 0
    %v983 = vsel %vm967, 1, 0
    %v984 = vsel %vm968, 1, 0
    %v985 = vsel %vm969, 1, 0
    %v986 = vsel %vm970, 1, 0
    %v987 = vsel %vm971, 1, 0
    %v988 = vsel %vm972, 1, 0
    %v989 = vsel %vm973, 1, 0
    %v990 = vsel %vm974, 1, 0
    %v991 = vsel %vm975, 1, 0
    %v992 = vsel %vm976, 1, 0
    %v993 = vsel %vm977, 1, 0
    %v994 = vcvt.s32.f32 %v978
    %v995 = vcvt.s32.f32 %v979
    %v996 = vcvt.s32.f32 %v980
    %v997 = vcvt.s32.f32 %v981
    %v998 = vcvt.s32.f32 %v982
    %v999 = vcvt.s32.f32 %v983
    %v1000 = vcvt.s32.f32 %v984
    %v1001 = vcvt.s32.f32 %v985
    %v1002 = vcvt.s32.f32 %v986
    %v1003 = vcvt.s32.f32 %v987
    %v1004 = vcvt.s32.f32 %v988
    %v1005 = vcvt.s32.f32 %v989
    %v1006 = vcvt.s32.f32 %v990
    %v1007 = vcvt.s32.f32 %v991
    %v1008 = vcvt.s32.f32 %v992
    %v1009 = vcvt.s32.f32 %v993
    %v1010 = vmul.f32 %v946, %v994
    %v1011 = vmul.f32 %v947, %v995
    %v1012 = vmul.f32 %v948, %v996
    %v1013 = vmul.f32 %v949, %v997
    %v1014 = vmul.f32 %v950, %v998
    %v1015 = vmul.f32 %v951, %v999
    %v1016 = vmul.f32 %v952, %v1000
    %v1017 = vmul.f32 %v953, %v1001
    %v1018 = vmul.f32 %v954, %v1002
    %v1019 = vmul.f32 %v955, %v1003
    %v1020 = vmul.f32 %v956, %v1004
    %v1021 = vmul.f32 %v957, %v1005
    %v1022 = vmul.f32 %v958, %v1006
    %v1023 = vmul.f32 %v959, %v1007
    %v1024 = vmul.f32 %v960, %v1008
    %v1025 = vmul.f32 %v961, %v1009
    %vm1026 = vcmask 7168
    %v1027 = vsel %vm1026, %v1010, 0.0
    %v1028 = vsel %vm1026, %v1011, 0.0
    %v1029 = vadd.f32 %v1027, %v1028
    %v1030 = vsel %vm1026, %v1012, 0.0
    %v1031 = vadd.f32 %v1029, %v1030
    %v1032 = vsel %vm1026, %v1013, 0.0
    %v1033 = vadd.f32 %v1031, %v1032
    %v1034 = vsel %vm1026, %v1014, 0.0
    %v1035 = vadd.f32 %v1033, %v1034
    %v1036 = vsel %vm1026, %v1015, 0.0
    %v1037 = vadd.f32 %v1035, %v1036
    %v1038 = vsel %vm1026, %v1016, 0.0
    %v1039 = vadd.f32 %v1037, %v1038
    %v1040 = vsel %vm1026, %v1017, 0.0
    %v1041 = vadd.f32 %v1039, %v1040
    %v1042 = vsel %vm1026, %v1018, 0.0
    %v1043 = vadd.f32 %v1041, %v1042
    %v1044 = vsel %vm1026, %v1019, 0.0
    %v1045 = vadd.f32 %v1043, %v1044
    %v1046 = vsel %vm1026, %v1020, 0.0
    %v1047 = vadd.f32 %v1045, %v1046
    %v1048 = vsel %vm1026, %v1021, 0.0
    %v1049 = vadd.f32 %v1047, %v1048
    %v1050 = vsel %vm1026, %v1022, 0.0
    %v1051 = vadd.f32 %v1049, %v1050
    %v1052 = vsel %vm1026, %v1023, 0.0
    %v1053 = vadd.f32 %v1051, %v1052
    %v1054 = vsel %vm1026, %v1024, 0.0
    %v1055 = vadd.f32 %v1053, %v1054
    %v1056 = vsel %vm1026, %v1025, 0.0
    %v1057 = vadd.f32 %v1055, %v1056
    %1058 = vadd.xlane.f32.xlu0 %v1057
    %v1059 = vpop.xlane.xlu0 %1058
    %v1060 = vrot.slane %v1059, 4
    %v1061 = vadd.f32 %v1059, %v1060
    %v1062 = vrot.slane %v1061, 2
    %v1063 = vadd.f32 %v1061, %v1062
    %v1064 = vrot.slane %v1063, 1
    %v1065 = vadd.f32 %v1063, %v1064
    %s1066 = vtos %v1065
    %v1067 = vstv %s1066
    %vm1068 = vcmask 0
    %1069 = vst.msk [vmem:[#allocation2] sm:$0x1] %vm1068, %v1067
    %v1070 = vsel %vm1026, %v994, 0.0
    %v1071 = vsel %vm1026, %v995, 0.0
    %v1072 = vadd.f32 %v1070, %v1071
    %v1073 = vsel %vm1026, %v996, 0.0
    %v1074 = vadd.f32 %v1072, %v1073
    %v1075 = vsel %vm1026, %v997, 0.0
    %v1076 = vadd.f32 %v1074, %v1075
    %v1077 = vsel %vm1026, %v998, 0.0
    %v1078 = vadd.f32 %v1076, %v1077
    %v1079 = vsel %vm1026, %v999, 0.0
    %v1080 = vadd.f32 %v1078, %v1079
    %v1081 = vsel %vm1026, %v1000, 0.0
    %v1082 = vadd.f32 %v1080, %v1081
    %v1083 = vsel %vm1026, %v1001, 0.0
    %v1084 = vadd.f32 %v1082, %v1083
    %v1085 = vsel %vm1026, %v1002, 0.0
    %v1086 = vadd.f32 %v1084, %v1085
    %v1087 = vsel %vm1026, %v1003, 0.0
    %v1088 = vadd.f32 %v1086, %v1087
    %v1089 = vsel %vm1026, %v1004, 0.0
    %v1090 = vadd.f32 %v1088, %v1089
    %v1091 = vsel %vm1026, %v1005, 0.0
    %v1092 = vadd.f32 %v1090, %v1091
    %v1093 = vsel %vm1026, %v1006, 0.0
    %v1094 = vadd.f32 %v1092, %v1093
    %v1095 = vsel %vm1026, %v1007, 0.0
    %v1096 = vadd.f32 %v1094, %v1095
    %v1097 = vsel %vm1026, %v1008, 0.0
    %v1098 = vadd.f32 %v1096, %v1097
    %v1099 = vsel %vm1026, %v1009, 0.0
    %v1100 = vadd.f32 %v1098, %v1099
    %1101 = vadd.xlane.f32.xlu0 %v1100
    %v1102 = vpop.xlane.xlu0 %1101
    %v1103 = vrot.slane %v1102, 4
    %v1104 = vadd.f32 %v1102, %v1103
    %v1105 = vrot.slane %v1104, 2
    %v1106 = vadd.f32 %v1104, %v1105
    %v1107 = vrot.slane %v1106, 1
    %v1108 = vadd.f32 %v1106, %v1107
    %s1109 = vtos %v1108
    %v1110 = vstv %s1109
    %1111 = vst.msk [vmem:[#allocation4] sm:$0x1] %vm1068, %v1110
    // Predicated region
    $region10: #{tpu_custom_call.1} parent=1 // pred_check
      _
    $region11: #{tpu_custom_call.1} parent=1 // pred_check_branch
      %1113 = sbr.rel (0) target = $region13
    $region12: #{tpu_custom_call.1} parent=1 // pred_region
      %1115 = vsyncadd [#allocation3], 0
      %s1117 = sshll.u32 [#allocation2], 4
      %s1118 = int_to_ptr.vmem [resolvable:$true] %s1117
      %s1119 = sshll.u32 %s2, 4
      %s1120 = int_to_ptr.hbm [resolvable:$true] %s1119
      %1122 = dma.vmem_to_hbm [thread:$0]  %s1118, 16, %s1120, [#allocation3]
    $region13: #{tpu_custom_call.1} parent=1 // pred_fallthru
      _
    // Predicated region
    $region14: #{tpu_custom_call.1} parent=1 // pred_check
      _
    $region15: #{tpu_custom_call.1} parent=1 // pred_check_branch
      %1124 = sbr.rel (0) target = $region17
    $region16: #{tpu_custom_call.1} parent=1 // pred_region
      %1126 = vsyncadd [#allocation5], 0
      %s1128 = sshll.u32 [#allocation4], 4
      %s1129 = int_to_ptr.vmem [resolvable:$true] %s1128
      %s1130 = sshll.u32 %s3, 4
      %s1131 = int_to_ptr.hbm [resolvable:$true] %s1130
      %1133 = dma.vmem_to_hbm [thread:$0]  %s1129, 16, %s1131, [#allocation5]
    $region17: #{tpu_custom_call.1} parent=1 // pred_fallthru
      _
    // Predicated region
    $region18: #{tpu_custom_call.1} parent=1 // pred_check
      _
    $region19: #{tpu_custom_call.1} parent=1 // pred_check_branch
      %1135 = sbr.rel (0) target = $region21
    $region20: #{tpu_custom_call.1} parent=1 // pred_region
      %1137 = dma.done [#allocation3], 16
    $region21: #{tpu_custom_call.1} parent=1 // pred_fallthru
      _
    // Predicated region
    $region22: #{tpu_custom_call.1} parent=1 // pred_check
      _
    $region23: #{tpu_custom_call.1} parent=1 // pred_check_branch
      %1139 = sbr.rel (0) target = $region25
    $region24: #{tpu_custom_call.1} parent=1 // pred_region
      %1141 = dma.done [#allocation5], 16
    $region25: #{tpu_custom_call.1} parent=1 // pred_fallthru
      _
    %1142 = vsyncpa [#allocation3], 1
    %1143 = vsyncpa [#allocation5], 1

</llo_original>
